<compile_context>
chip_gen: v6e
topology: v6e:2x2x1
jax: 0.10.0
libtpu: 0.0.40
codegen_flags: <defaults>
</compile_context>

<pallas_src>
import jax
import jax.numpy as jnp
from jax.experimental import pallas as pl
from jax.experimental.pallas import tpu as pltpu


def _make_rect_kernel(acc_into_out: bool):
    def kernel(adj_ref, x_ref, wc_ref, bc_ref, wlt_ref, bl_ref, out_ref, *scratch):
        # adj_ref: [tn, tk] bf16   row/col tile of normalized adjacency
        # x_ref  : [N,  C ] bf16   full node features, resident in VMEM
        # wc_ref : [C,  H ] f32    GCNConv weight
        # bc_ref : [1,  H ] f32    GCNConv bias
        # wlt_ref: [H,  C ] f32    Linear weight, pre-transposed (torch W_lin.T)
        # bl_ref : [1,  C ] f32    Linear bias
        # out_ref: [tn, C ]        output tile (resident across the k axis)
        # scratch: optional [tn,C] f32 accumulator (only when out dtype != f32)
        acc_ref = out_ref if acc_into_out else scratch[0]
        k = pl.program_id(1)
        tk = adj_ref.shape[1]

        @pl.when(k == 0)
        def _():
            acc_ref[...] = jnp.zeros_like(acc_ref)

        # Partial sum of (adj @ x) over the adjacency-column (k) axis,
        # slicing the matching row-chunk out of the resident x.
        align = 128 if tk % 128 == 0 else 8
        start = pl.multiple_of(k * tk, align)
        x_chunk = x_ref[pl.ds(start, tk), :]
        acc_ref[...] += jnp.dot(
            adj_ref[...], x_chunk, preferred_element_type=jnp.float32
        ).astype(acc_ref.dtype)

        @pl.when(k == pl.num_programs(1) - 1)
        def _():
            ax = acc_ref[...].astype(jnp.float32)                       # [tn, C]
            h = jnp.dot(ax, wc_ref[...],
                        preferred_element_type=jnp.float32) + bc_ref[...]  # [tn, H]
            # TODO(synk): dropout with p > 0 in training mode would need
            # pltpu.prng_seed / pltpu.prng_random_bits; default p=0.0 is identity.
            out = jnp.dot(h, wlt_ref[...],
                          preferred_element_type=jnp.float32) + bl_ref[...]  # [tn, C]
            out_ref[...] = out.astype(out_ref.dtype)

    return kernel


def rect_l_forward(x, adj, w_conv, b_conv, w_lin, b_lin, *, tn=256, tk=2048):
    """RECT_L forward.  x: [N, C], adj: [N, N] dense normalized adjacency,
    w_conv: [C, H], b_conv: [H], w_lin: [C, H] (torch layout), b_lin: [C]."""
    N, C = x.shape
    H = w_conv.shape[1]
    assert adj.shape == (N, N)
    assert w_lin.shape == (C, H)

    tn = min(tn, N)
    tk = min(tk, N)
    # v7x megacore: keep at least 2 row tiles so the "parallel" i axis can
    # be split across both TensorCores.
    if N // tn < 2:
        half = N // 2
        if half >= 8 and half % 8 == 0 and N % half == 0:
            tn = half
    assert N % tn == 0 and tn % 8 == 0, "tn must divide N and be a multiple of 8"
    assert N % tk == 0 and (tk % 128 == 0 or tk == N), \
        "tk must divide N and be a multiple of 128 (or equal N)"

    # bf16 operands for the dominant MXU contraction; tiny epilogue weights
    # stay f32 for tighter parity with the f32 reference.
    adj_b = adj.astype(jnp.bfloat16)
    x_b = x.astype(jnp.bfloat16)
    wc = w_conv.astype(jnp.float32)
    wlt = jnp.transpose(w_lin).astype(jnp.float32)      # one-time transpose: [H, C]
    bc2 = b_conv.reshape(1, H).astype(jnp.float32)
    bl2 = b_lin.reshape(1, C).astype(jnp.float32)

    out_dtype = x.dtype
    out_bytes = jnp.dtype(out_dtype).itemsize
    acc_into_out = jnp.dtype(out_dtype) == jnp.float32
    grid = (N // tn, N // tk)

    # Advisory cost estimate for the XLA scheduler (matches resident-x traffic).
    cost = pl.CostEstimate(
        flops=2 * N * N * C + 2 * N * C * H + 2 * N * H * C,
        transcendentals=0,
        bytes_accessed=(N * N * 2                      # adjacency stream (bf16)
                        + N * C * 2                    # x, fetched once
                        + (C * H + H * C + H + C) * 4  # weights + biases
                        + N * C * out_bytes),          # output
    )

    # Generation-aware VMEM budget with headroom for Mosaic internals.
    try:
        vmem_phys = int(pltpu.get_tpu_info().vmem_capacity_bytes)
    except Exception:  # pragma: no cover - conservative fallback
        vmem_phys = 64 << 20
    vmem_cap = int(vmem_phys * 0.8)

    vmem_need = (
        2 * tn * tk * 2                    # adj tile, double-buffered bf16
        + 2 * N * C * 2                    # resident x (counted x2, conservative)
        + (C * H + H * C + H + C) * 4      # f32 weights + biases
        + 2 * tn * C * out_bytes           # output tile
        + (0 if acc_into_out else tn * C * 4)
    )
    vmem_limit = int(min(max(2 * vmem_need + (8 << 20), 32 << 20), vmem_cap))

    scratch_shapes = [] if acc_into_out else [pltpu.VMEM((tn, C), jnp.float32)]

    return pl.pallas_call(
        _make_rect_kernel(acc_into_out),
        out_shape=jax.ShapeDtypeStruct((N, C), out_dtype),
        grid_spec=pltpu.PrefetchScalarGridSpec(
            num_scalar_prefetch=0,
            grid=grid,
            in_specs=[
                pl.BlockSpec((tn, tk), lambda i, k: (i, k)),  # adj tile
                pl.BlockSpec((N, C), lambda i, k: (0, 0)),    # x, resident
                pl.BlockSpec((C, H), lambda i, k: (0, 0)),    # W_conv
                pl.BlockSpec((1, H), lambda i, k: (0, 0)),    # b_conv
                pl.BlockSpec((H, C), lambda i, k: (0, 0)),    # W_lin^T
                pl.BlockSpec((1, C), lambda i, k: (0, 0)),    # b_lin
            ],
            out_specs=pl.BlockSpec((tn, C), lambda i, k: (i, 0)),
            scratch_shapes=scratch_shapes,
        ),
        compiler_params=pltpu.CompilerParams(
            dimension_semantics=("parallel", "arbitrary"),
            vmem_limit_bytes=vmem_limit,
        ),
        cost_estimate=cost,
    )(adj_b, x_b, wc, bc2, wlt, bl2)


def _glorot(key, shape):
    fan_in, fan_out = shape[1], shape[0]
    limit = jnp.sqrt(6.0 / (fan_in + fan_out))
    return jax.random.uniform(key, shape, jnp.float32, -limit, limit)


def _reference(x, adj, w_conv, b_conv, w_lin, b_lin):
    h = adj @ (x @ w_conv) + b_conv
    return h @ w_lin.T + b_lin


if __name__ == "__main__":
    # Small synthetic problem: N nodes, in_channels C, hidden H.
    N, C, H = 256, 32, 64
    tn, tk = 128, 128   # grid (2, 2): exercises the parallel axis, the k-axis
                        # accumulation, and the in-kernel dynamic x slice.

    key = jax.random.PRNGKey(0)
    k_x, k_a, k_wc, k_wl, k_bl = jax.random.split(key, 5)

    x = jax.random.normal(k_x, (N, C), jnp.float32)

    # Symmetric, self-looped, D^{-1/2} A D^{-1/2}-normalized adjacency.
    a = (jax.random.uniform(k_a, (N, N)) < 0.05).astype(jnp.float32)
    a = jnp.maximum(a, a.T)
    a = a + jnp.eye(N, dtype=jnp.float32)
    deg = a.sum(axis=1)
    d_inv_sqrt = 1.0 / jnp.sqrt(deg)
    adj = a * d_inv_sqrt[:, None] * d_inv_sqrt[None, :]

    # Deterministic parameter init (shapes per RECT_L.__init__).
    w_conv = _glorot(k_wc, (C, H))                       # GCNConv weight [in, hidden]
    b_conv = jnp.zeros((H,), jnp.float32)                # GCNConv bias
    w_lin = _glorot(k_wl, (C, H))                        # xavier_uniform_, torch layout [out, in]
    b_lin = 0.01 * jax.random.normal(k_bl, (C,), jnp.float32)

    out = rect_l_forward(x, adj, w_conv, b_conv, w_lin, b_lin, tn=tn, tk=tk)
    out = jax.block_until_ready(out)

    ref = _reference(x, adj, w_conv, b_conv, w_lin, b_lin)
    assert out.shape == (N, C)
    # bf16 adj/x on the MXU with f32 accumulation: loosened tolerance vs. f32 ref.
    assert jnp.allclose(out, ref, atol=3e-2, rtol=3e-2), \
        float(jnp.max(jnp.abs(out - ref)))

    print("KERNEL_OK")
</pallas_src>

<mosaic_0001>
module attributes {stable_mosaic.version = 11 : i64} {
  func.func @kernel(%arg0: i32, %arg1: i32, %arg2: memref<128x128xbf16, #tpu.memory_space<vmem>>, %arg3: memref<256x32xbf16, #tpu.memory_space<vmem>>, %arg4: memref<32x64xf32, #tpu.memory_space<vmem>>, %arg5: memref<1x64xf32, #tpu.memory_space<vmem>>, %arg6: memref<64x32xf32, #tpu.memory_space<vmem>>, %arg7: memref<1x32xf32, #tpu.memory_space<vmem>>, %arg8: memref<128x32xf32, #tpu.memory_space<vmem>>) attributes {dimension_semantics = [#tpu.dimension_semantics<parallel>, #tpu.dimension_semantics<arbitrary>], iteration_bounds = array<i64: 2, 2>, scalar_prefetch = 0 : i64, scratch_operands = 0 : i64, tpu.core_type = #tpu.core_type<tc>, window_params = [{transform_indices = @transform_0, window_bounds = array<i64: 128, 128>}, {pipeline_mode = #tpu.pipeline_mode<synchronous>, transform_indices = @transform_1, window_bounds = array<i64: 256, 32>}, {pipeline_mode = #tpu.pipeline_mode<synchronous>, transform_indices = @transform_2, window_bounds = array<i64: 32, 64>}, {pipeline_mode = #tpu.pipeline_mode<synchronous>, transform_indices = @transform_3, window_bounds = array<i64: 1, 64>}, {pipeline_mode = #tpu.pipeline_mode<synchronous>, transform_indices = @transform_4, window_bounds = array<i64: 64, 32>}, {pipeline_mode = #tpu.pipeline_mode<synchronous>, transform_indices = @transform_5, window_bounds = array<i64: 1, 32>}, {transform_indices = @transform_6, window_bounds = array<i64: 128, 32>}]} {
    %c0_i32 = arith.constant 0 : i32
    %0 = arith.cmpi eq, %arg1, %c0_i32 : i32
    %1 = arith.extui %0 : i1 to i32
    %c0_i32_0 = arith.constant 0 : i32
    %2 = arith.cmpi ne, %1, %c0_i32_0 : i32
    scf.if %2 {
      %cst_8 = arith.constant 0.000000e+00 : f32
      %15 = vector.broadcast %cst_8 : f32 to vector<128x32xf32>
      %c0_9 = arith.constant 0 : index
      %c0_10 = arith.constant 0 : index
      %16 = vector.load %arg8[%c0_9, %c0_10] : memref<128x32xf32, #tpu.memory_space<vmem>>, vector<128x32xf32>
      tpu.vector_store %arg8[%c0_9, %c0_10], %15 {strides = array<i32>} : memref<128x32xf32, #tpu.memory_space<vmem>>, vector<128x32xf32>,
    } else {
    }
    %c128_i32 = arith.constant 128 : i32
    %3 = arith.muli %arg1, %c128_i32 : i32
    %4 = tpu.assume_multiple %3, 128 : i32
    %5 = arith.index_cast %4 : i32 to index
    %c0 = arith.constant 0 : index
    %6 = vector.load %arg3[%5, %c0] : memref<256x32xbf16, #tpu.memory_space<vmem>>, vector<128x32xbf16>
    %c0_1 = arith.constant 0 : index
    %c0_2 = arith.constant 0 : index
    %7 = vector.load %arg8[%c0_1, %c0_2] : memref<128x32xf32, #tpu.memory_space<vmem>>, vector<128x32xf32>
    %c0_3 = arith.constant 0 : index
    %c0_4 = arith.constant 0 : index
    %8 = vector.load %arg2[%c0_3, %c0_4] : memref<128x128xbf16, #tpu.memory_space<vmem>>, vector<128x128xbf16>
    %cst = arith.constant dense<0.000000e+00> : vector<128x32xf32>
    %9 = tpu.matmul %8, %6, %cst {dimension_numbers = #tpu.dot_dimension_numbers<[1], [0], [0], [1], [0, 0, 1, 1], [], []>} : vector<128x128xbf16>, vector<128x32xbf16>, vector<128x32xf32> -> vector<128x32xf32>
    %10 = arith.addf %7, %9 : vector<128x32xf32>
    %c0_5 = arith.constant 0 : index
    %c0_6 = arith.constant 0 : index
    %11 = vector.load %arg8[%c0_5, %c0_6] : memref<128x32xf32, #tpu.memory_space<vmem>>, vector<128x32xf32>
    tpu.vector_store %arg8[%c0_5, %c0_6], %10 {strides = array<i32>} : memref<128x32xf32, #tpu.memory_space<vmem>>, vector<128x32xf32>,
    %c1_i32 = arith.constant 1 : i32
    %12 = arith.cmpi eq, %arg1, %c1_i32 : i32
    %13 = arith.extui %12 : i1 to i32
    %c0_i32_7 = arith.constant 0 : i32
    %14 = arith.cmpi ne, %13, %c0_i32_7 : i32
    scf.if %14 {
      %c0_8 = arith.constant 0 : index
      %c0_9 = arith.constant 0 : index
      %15 = vector.load %arg8[%c0_8, %c0_9] : memref<128x32xf32, #tpu.memory_space<vmem>>, vector<128x32xf32>
      %c0_10 = arith.constant 0 : index
      %c0_11 = arith.constant 0 : index
      %16 = vector.load %arg4[%c0_10, %c0_11] : memref<32x64xf32, #tpu.memory_space<vmem>>, vector<32x64xf32>
      %cst_12 = arith.constant dense<0.000000e+00> : vector<128x64xf32>
      %17 = tpu.matmul %15, %16, %cst_12 {dimension_numbers = #tpu.dot_dimension_numbers<[1], [0], [0], [1], [0, 0, 1, 1], [], []>} : vector<128x32xf32>, vector<32x64xf32>, vector<128x64xf32> -> vector<128x64xf32>
      %c0_13 = arith.constant 0 : index
      %c0_14 = arith.constant 0 : index
      %18 = vector.load %arg5[%c0_13, %c0_14] : memref<1x64xf32, #tpu.memory_space<vmem>>, vector<1x64xf32>
      %19 = vector.broadcast %18 : vector<1x64xf32> to vector<128x64xf32>
      %20 = arith.addf %17, %19 : vector<128x64xf32>
      %c0_15 = arith.constant 0 : index
      %c0_16 = arith.constant 0 : index
      %21 = vector.load %arg6[%c0_15, %c0_16] : memref<64x32xf32, #tpu.memory_space<vmem>>, vector<64x32xf32>
      %cst_17 = arith.constant dense<0.000000e+00> : vector<128x32xf32>
      %22 = tpu.matmul %20, %21, %cst_17 {dimension_numbers = #tpu.dot_dimension_numbers<[1], [0], [0], [1], [0, 0, 1, 1], [], []>} : vector<128x64xf32>, vector<64x32xf32>, vector<128x32xf32> -> vector<128x32xf32>
      %c0_18 = arith.constant 0 : index
      %c0_19 = arith.constant 0 : index
      %23 = vector.load %arg7[%c0_18, %c0_19] : memref<1x32xf32, #tpu.memory_space<vmem>>, vector<1x32xf32>
      %24 = vector.broadcast %23 : vector<1x32xf32> to vector<128x32xf32>
      %25 = arith.addf %22, %24 : vector<128x32xf32>
      %c0_20 = arith.constant 0 : index
      %c0_21 = arith.constant 0 : index
      %26 = vector.load %arg8[%c0_20, %c0_21] : memref<128x32xf32, #tpu.memory_space<vmem>>, vector<128x32xf32>
      tpu.vector_store %arg8[%c0_20, %c0_21], %25 {strides = array<i32>} : memref<128x32xf32, #tpu.memory_space<vmem>>, vector<128x32xf32>,
    } else {
    }
    return
  }
  func.func @transform_0(%arg0: i32, %arg1: i32) -> (i32, i32) {
    %c0_i32 = arith.constant 0 : i32
    return %arg0, %arg1 : i32, i32
  }
  func.func @transform_1(%arg0: i32, %arg1: i32) -> (i32, i32) {
    %c0_i32 = arith.constant 0 : i32
    %c0_i32_0 = arith.constant 0 : i32
    %c0_i32_1 = arith.constant 0 : i32
    return %c0_i32, %c0_i32_0 : i32, i32
  }
  func.func @transform_2(%arg0: i32, %arg1: i32) -> (i32, i32) {
    %c0_i32 = arith.constant 0 : i32
    %c0_i32_0 = arith.constant 0 : i32
    %c0_i32_1 = arith.constant 0 : i32
    return %c0_i32, %c0_i32_0 : i32, i32
  }
  func.func @transform_3(%arg0: i32, %arg1: i32) -> (i32, i32) {
    %c0_i32 = arith.constant 0 : i32
    %c0_i32_0 = arith.constant 0 : i32
    %c0_i32_1 = arith.constant 0 : i32
    return %c0_i32, %c0_i32_0 : i32, i32
  }
  func.func @transform_4(%arg0: i32, %arg1: i32) -> (i32, i32) {
    %c0_i32 = arith.constant 0 : i32
    %c0_i32_0 = arith.constant 0 : i32
    %c0_i32_1 = arith.constant 0 : i32
    return %c0_i32, %c0_i32_0 : i32, i32
  }
  func.func @transform_5(%arg0: i32, %arg1: i32) -> (i32, i32) {
    %c0_i32 = arith.constant 0 : i32
    %c0_i32_0 = arith.constant 0 : i32
    %c0_i32_1 = arith.constant 0 : i32
    return %c0_i32, %c0_i32_0 : i32, i32
  }
  func.func @transform_6(%arg0: i32, %arg1: i32) -> (i32, i32) {
    %c0_i32 = arith.constant 0 : i32
    %c0_i32_0 = arith.constant 0 : i32
    return %arg0, %c0_i32 : i32, i32
  }
}

</mosaic_0001>

<llo_original>
// kernel: tpu_custom_call.1
$region0: #{tpu_custom_call.1}
  #allocation0 [shape = 'u32[]', space=smem, size = 0x4, offset = 0x4, fixed_abs, tag = 'smem constant byte address 0x4 - core index']
  #allocation1 [shape = 'u32[144,128]{1,0:T(1,128)}', space=vmem, size = 0x12000, scoped, tag = 'internal scratch']
  %s0 = inlined_call_operand.vmem [shape: bf16[256,256], index: 0, kind: input, shape index: {}]
  %s1 = inlined_call_operand.vmem [shape: bf16[256,32], index: 1, kind: input, shape index: {}]
  %s2 = inlined_call_operand.hbm [shape: f32[32,64], index: 2, kind: input, shape index: {}]
  %s3 = inlined_call_operand.vmem [shape: f32[1,64], index: 3, kind: input, shape index: {}]
  %s4 = inlined_call_operand.vmem [shape: f32[64,32], index: 4, kind: input, shape index: {}]
  %s5 = inlined_call_operand.vmem [shape: f32[1,32], index: 5, kind: input, shape index: {}]
  %s6 = inlined_call_operand.vmem [shape: f32[256,32], index: 6, kind: output, shape index: {}]
  %s7 = sld [smem:[#allocation0]]
  $region110: #{tpu_custom_call.1} parent=0
    _
  %s9 = ssub.s32 1, %s7
  %s10 = scalar_select 0, %s9, %s7
  $region1: #{tpu_custom_call.1} parent=0
    #allocation2 [shape = 'u8[65536]{0}', space=vmem, size = 0x10000, scoped, tag = 'input window, operand 0']
    #allocation3 [shape = 'u8[16384]{0}', space=vmem, size = 0x4000, scoped, tag = 'input window, operand 2, single buffered']
    #allocation4 [shape = 's32[2]{0}', space=sflag, size = 0x8, scoped, tag = 'scoped memory for tpu_custom_call.1']
    %11 = vsyncpa [#allocation4], 0
    loop: start=0, step=1, limit=6
    $region2: #{tpu_custom_call.1} parent=1 // loop_pre_header
      _
    $region3: #{tpu_custom_call.1} parent=1 // loop_header
      %s13 = sphi 0, %s17
      %p14 = scmp.ge.s32.totalorder %s13, 6
      %s20 = sphi 0, %s32
      %s21 = sphi 0, %s28
      %s22 = sphi 0, %s20
      %s23 = sphi 0, %s21
      %s24 = sphi 0, %s22
      %s25 = sphi 0, %s23
      %s37 = sphi 0, %s39
      %s40 = sphi 0, %s37
      %s41 = sphi 0, %s40
      %s57 = sphi 0, %s41
      %s61 = sphi 0, %s61
      %s63 = sphi 0, %s61
      %s64 = sphi 0, %s63
      %s78 = sphi 0, %s64
      %s82 = sphi 0, %s82
      %s84 = sphi 0, %s82
      %s85 = sphi 0, %s84
      %s99 = sphi 0, %s85
      %s103 = sphi 0, %s103
      %s105 = sphi 0, %s103
      %s106 = sphi 0, %s105
      %s120 = sphi 0, %s106
      %s124 = sphi 0, %s124
      %s126 = sphi 0, %s124
      %s127 = sphi 0, %s126
      %s141 = sphi 0, %s127
      %s145 = sphi 0, %s145
      %s147 = sphi 0, %s145
      %s148 = sphi 0, %s147
      %s162 = sphi 0, %s148
      %s168 = sphi 0, %s170
      %s171 = sphi 0, %s168
      %s172 = sphi 0, %s171
      %s188 = sphi 0, %s172
    $region4: #{tpu_custom_call.1} parent=1 // loop_header_branch
      %16 = sbr.rel (%p14) target = $region8
    $region5: #{tpu_custom_call.1} parent=1 // loop_body
      %s18 = ssub.s32 %s13, 1
      %s19 = ssub.s32 %s13, 2
      %s26 = sadd.s32 1, %s21
      %p27 = scmp.ge.s32.totalorder %s26, 2
      %s28 = scalar_select %p27, 0, %s26
      %s29 = sadd.s32 1, %s20
      %s30 = scalar_select %p27, %s29, %s20
      %p31 = scmp.ge.s32.totalorder %s30, 2
      %s32 = scalar_select %p31, 0, %s30
      %s33 = ssub.s32 %s20, %s32
      %s34 = ssub.s32 %s21, %s28
      %s35 = sor.u32 %s33, %s34
      %p36 = scmp.eq.s32.totalorder %s35, 0
      %s38 = sadd.s32 %s37, 1
      %s39 = scalar_select %p36, %s37, %s38
      %p42 = pneg %p36
      %p43 = scmp.eq.s32.totalorder %s13, 3
      %p44 = por %p42, %p43
      %p45 = scmp.ne.s32.totalorder %s37, %s40
      %p46 = scmp.eq.s32.totalorder %s13, 0
      %p47 = por %p45, %p46
      %p48 = scmp.ne.s32.totalorder %s37, %s40
      %p49 = scmp.eq.s32.totalorder %s18, 3
      %p50 = por %p48, %p49
      %p51 = scmp.ne.s32.totalorder %s40, %s41
      %p52 = scmp.eq.s32.totalorder %s18, 0
      %p53 = por %p51, %p52
      %p54 = scmp.ne.s32.totalorder %s40, %s41
      %p55 = scmp.eq.s32.totalorder %s19, 3
      %p56 = por %p54, %p55
      %p58 = scmp.ne.s32.totalorder %s41, %s57
      %p59 = scmp.eq.s32.totalorder %s19, 0
      %p60 = por %p58, %p59
      %s62 = sadd.s32 %s61, 1
      %p65 = scmp.eq.s32.totalorder %s13, 3
      %p66 = scmp.ne.s32.totalorder %s61, %s63
      %p67 = scmp.eq.s32.totalorder %s13, 0
      %p68 = por %p66, %p67
      %p69 = scmp.ne.s32.totalorder %s61, %s63
      %p70 = scmp.eq.s32.totalorder %s18, 3
      %p71 = por %p69, %p70
      %p72 = scmp.ne.s32.totalorder %s63, %s64
      %p73 = scmp.eq.s32.totalorder %s18, 0
      %p74 = por %p72, %p73
      %p75 = scmp.ne.s32.totalorder %s63, %s64
      %p76 = scmp.eq.s32.totalorder %s19, 3
      %p77 = por %p75, %p76
      %p79 = scmp.ne.s32.totalorder %s64, %s78
      %p80 = scmp.eq.s32.totalorder %s19, 0
      %p81 = por %p79, %p80
      %s83 = sadd.s32 %s82, 1
      %p86 = scmp.eq.s32.totalorder %s13, 3
      %p87 = scmp.ne.s32.totalorder %s82, %s84
      %p88 = scmp.eq.s32.totalorder %s13, 0
      %p89 = por %p87, %p88
      %p90 = scmp.ne.s32.totalorder %s82, %s84
      %p91 = scmp.eq.s32.totalorder %s18, 3
      %p92 = por %p90, %p91
      %p93 = scmp.ne.s32.totalorder %s84, %s85
      %p94 = scmp.eq.s32.totalorder %s18, 0
      %p95 = por %p93, %p94
      %p96 = scmp.ne.s32.totalorder %s84, %s85
      %p97 = scmp.eq.s32.totalorder %s19, 3
      %p98 = por %p96, %p97
      %p100 = scmp.ne.s32.totalorder %s85, %s99
      %p101 = scmp.eq.s32.totalorder %s19, 0
      %p102 = por %p100, %p101
      %s104 = sadd.s32 %s103, 1
      %p107 = scmp.eq.s32.totalorder %s13, 3
      %p108 = scmp.ne.s32.totalorder %s103, %s105
      %p109 = scmp.eq.s32.totalorder %s13, 0
      %p110 = por %p108, %p109
      %p111 = scmp.ne.s32.totalorder %s103, %s105
      %p112 = scmp.eq.s32.totalorder %s18, 3
      %p113 = por %p111, %p112
      %p114 = scmp.ne.s32.totalorder %s105, %s106
      %p115 = scmp.eq.s32.totalorder %s18, 0
      %p116 = por %p114, %p115
      %p117 = scmp.ne.s32.totalorder %s105, %s106
      %p118 = scmp.eq.s32.totalorder %s19, 3
      %p119 = por %p117, %p118
      %p121 = scmp.ne.s32.totalorder %s106, %s120
      %p122 = scmp.eq.s32.totalorder %s19, 0
      %p123 = por %p121, %p122
      %s125 = sadd.s32 %s124, 1
      %p128 = scmp.eq.s32.totalorder %s13, 3
      %p129 = scmp.ne.s32.totalorder %s124, %s126
      %p130 = scmp.eq.s32.totalorder %s13, 0
      %p131 = por %p129, %p130
      %p132 = scmp.ne.s32.totalorder %s124, %s126
      %p133 = scmp.eq.s32.totalorder %s18, 3
      %p134 = por %p132, %p133
      %p135 = scmp.ne.s32.totalorder %s126, %s127
      %p136 = scmp.eq.s32.totalorder %s18, 0
      %p137 = por %p135, %p136
      %p138 = scmp.ne.s32.totalorder %s126, %s127
      %p139 = scmp.eq.s32.totalorder %s19, 3
      %p140 = por %p138, %p139
      %p142 = scmp.ne.s32.totalorder %s127, %s141
      %p143 = scmp.eq.s32.totalorder %s19, 0
      %p144 = por %p142, %p143
      %s146 = sadd.s32 %s145, 1
      %p149 = scmp.eq.s32.totalorder %s13, 3
      %p150 = scmp.ne.s32.totalorder %s145, %s147
      %p151 = scmp.eq.s32.totalorder %s13, 0
      %p152 = por %p150, %p151
      %p153 = scmp.ne.s32.totalorder %s145, %s147
      %p154 = scmp.eq.s32.totalorder %s18, 3
      %p155 = por %p153, %p154
      %p156 = scmp.ne.s32.totalorder %s147, %s148
      %p157 = scmp.eq.s32.totalorder %s18, 0
      %p158 = por %p156, %p157
      %p159 = scmp.ne.s32.totalorder %s147, %s148
      %p160 = scmp.eq.s32.totalorder %s19, 3
      %p161 = por %p159, %p160
      %p163 = scmp.ne.s32.totalorder %s148, %s162
      %p164 = scmp.eq.s32.totalorder %s19, 0
      %p165 = por %p163, %p164
      %s166 = ssub.s32 %s20, %s32
      %p167 = scmp.eq.s32.totalorder %s166, 0
      %s169 = sadd.s32 %s168, 1
      %s170 = scalar_select %p167, %s168, %s169
      %p173 = pneg %p167
      %p174 = scmp.eq.s32.totalorder %s13, 3
      %p175 = por %p173, %p174
      %p176 = scmp.ne.s32.totalorder %s168, %s171
      %p177 = scmp.eq.s32.totalorder %s13, 0
      %p178 = por %p176, %p177
      %p179 = scmp.ne.s32.totalorder %s168, %s171
      %p180 = scmp.eq.s32.totalorder %s18, 3
      %p181 = por %p179, %p180
      %p182 = scmp.ne.s32.totalorder %s171, %s172
      %p183 = scmp.eq.s32.totalorder %s18, 0
      %p184 = por %p182, %p183
      %p185 = scmp.ne.s32.totalorder %s171, %s172
      %p186 = scmp.eq.s32.totalorder %s19, 3
      %p187 = por %p185, %p186
      %p189 = scmp.ne.s32.totalorder %s172, %s188
      %p190 = scmp.eq.s32.totalorder %s19, 0
      %p191 = por %p189, %p190
      %p192 = scmp.le.s32.totalorder 1, %s13
      %p193 = scmp.lt.s32.totalorder %s13, 5
      %p194 = pnand %p192, %p193
      %p195 = pneg %p194
      // Predicated region
      $region9: #{tpu_custom_call.1} parent=5 // pred_check
        _
      $region10: #{tpu_custom_call.1} parent=5 // pred_check_branch
        %197 = sbr.rel (%p194) target = $region12
      $region11: #{tpu_custom_call.1} parent=5 // pred_region
        %s198 = ssub.s32 %s13, 1
        // Predicated region
        $region13: #{tpu_custom_call.1} parent=11 // pred_check
          %p199 = pneg %p74
        $region14: #{tpu_custom_call.1} parent=11 // pred_check_branch
          %201 = sbr.rel (%p199) target = $region16
        $region15: #{tpu_custom_call.1} parent=11 // pred_region
          _
        $region16: #{tpu_custom_call.1} parent=11 // pred_fallthru
          _
        // Predicated region
        $region17: #{tpu_custom_call.1} parent=11 // pred_check
          %p202 = pneg %p95
        $region18: #{tpu_custom_call.1} parent=11 // pred_check_branch
          %204 = sbr.rel (%p202) target = $region20
        $region19: #{tpu_custom_call.1} parent=11 // pred_region
          %s206 = ssub.s32 512, 512
          %207 = vsyncadd [#allocation4], %s206
          %s208 = sshll.u32 [#allocation3], 4
          %s209 = int_to_ptr.vmem [resolvable:$true] %s208
          %214 = dma.hbm_to_vmem [thread:$0]  %s2, 512, %s209, [#allocation4], 128, 128, 8
        $region20: #{tpu_custom_call.1} parent=11 // pred_fallthru
          _
        // Predicated region
        $region21: #{tpu_custom_call.1} parent=11 // pred_check
          %p215 = pneg %p116
        $region22: #{tpu_custom_call.1} parent=11 // pred_check_branch
          %217 = sbr.rel (%p215) target = $region24
        $region23: #{tpu_custom_call.1} parent=11 // pred_region
          _
        $region24: #{tpu_custom_call.1} parent=11 // pred_fallthru
          _
        // Predicated region
        $region25: #{tpu_custom_call.1} parent=11 // pred_check
          %p218 = pneg %p137
        $region26: #{tpu_custom_call.1} parent=11 // pred_check_branch
          %220 = sbr.rel (%p218) target = $region28
        $region27: #{tpu_custom_call.1} parent=11 // pred_region
          _
        $region28: #{tpu_custom_call.1} parent=11 // pred_fallthru
          _
        // Predicated region
        $region29: #{tpu_custom_call.1} parent=11 // pred_check
          %p221 = pneg %p158
        $region30: #{tpu_custom_call.1} parent=11 // pred_check_branch
          %223 = sbr.rel (%p221) target = $region32
        $region31: #{tpu_custom_call.1} parent=11 // pred_region
          _
        $region32: #{tpu_custom_call.1} parent=11 // pred_fallthru
          _
      $region12: #{tpu_custom_call.1} parent=5 // pred_fallthru
        _
      %p224 = scmp.lt.s32.totalorder %s13, 4
      // Predicated region
      $region33: #{tpu_custom_call.1} parent=5 // pred_check
        %p225 = pneg %p224
      $region34: #{tpu_custom_call.1} parent=5 // pred_check_branch
        %227 = sbr.rel (%p225) target = $region36
      $region35: #{tpu_custom_call.1} parent=5 // pred_region
        // Predicated region
        $region37: #{tpu_custom_call.1} parent=35 // pred_check
          %p228 = pneg %p47
        $region38: #{tpu_custom_call.1} parent=35 // pred_check_branch
          %230 = sbr.rel (%p228) target = $region40
        $region39: #{tpu_custom_call.1} parent=35 // pred_region
          %s231 = sand.u32 %s37, 1
          %s232 = sand.u32 %s37, 1
          %s233 = smul.addr %s232, 64
          %s234 = scalar_lea.vmem [#allocation2], %s233
          %s235 = smul.u32 16, %s20
          %s236 = smul.addr %s235, 2
          %s237 = sadd.s32 %s21, %s236
          %s238 = smul.addr %s237, 4
          %s239 = scalar_lea.vmem %s0, %s238
          // Predicated region
          $region41: #{tpu_custom_call.1} parent=39 // pred_check
            _
          $region42: #{tpu_custom_call.1} parent=39 // pred_check_branch
            %241 = sbr.rel (0) target = $region44
          $region43: #{tpu_custom_call.1} parent=39 // pred_region
            // Predicated region
            $region45: #{tpu_custom_call.1} parent=43 // pred_check
              _
            $region46: #{tpu_custom_call.1} parent=43 // pred_check_branch
              %243 = sbr.rel target = $region48
            $region47: #{tpu_custom_call.1} parent=43 // pred_region
              // Predicated region
              $region60: #{tpu_custom_call.1} parent=47 // pred_check
                _
              $region61: #{tpu_custom_call.1} parent=47 // pred_check_branch
                %289 = sbr.rel (0) target = $region63
              $region62: #{tpu_custom_call.1} parent=47 // pred_region
                loop: start=0, step=1, limit=1
                $region64: #{tpu_custom_call.1} parent=62 // loop_pre_header
                  _
                $region65: #{tpu_custom_call.1} parent=62 // loop_header
                  %s291 = sphi 0, %s295
                  %p292 = scmp.ge.s32.totalorder %s291, 1
                  %s296 = sphi %s239, %s239
                  %s297 = sphi %s234, %s234
                $region66: #{tpu_custom_call.1} parent=62 // loop_header_branch
                  %294 = sbr.rel (%p292) target = $region70
                $region67: #{tpu_custom_call.1} parent=62 // loop_body
                  _
                $region68: #{tpu_custom_call.1} parent=62 // loop_footer
                  %s295 = sadd.s32 1, %s291
                $region69: #{tpu_custom_call.1} parent=62 // loop_footer_branch
                  %290 = sbr.rel target = $region65
                $region70: #{tpu_custom_call.1} parent=62 // loop_exit
                  _
                %s299 = ssub.s32 16, 1
                loop: start=0, step=1, limit=1
                $region71: #{tpu_custom_call.1} parent=62 // loop_pre_header
                  _
                $region72: #{tpu_custom_call.1} parent=62 // loop_header
                  %s301 = sphi 0, %s305
                  %p302 = scmp.ge.s32.totalorder %s301, 1
                  %s306 = sphi %s239, %s239
                  %s307 = sphi %s234, %s234
                $region73: #{tpu_custom_call.1} parent=62 // loop_header_branch
                  %304 = sbr.rel (%p302) target = $region77
                $region74: #{tpu_custom_call.1} parent=62 // loop_body
                  %v308 = vld [vmem:[%s306] sm:%s299]
                  %309 = vst [vmem:[%s307] sm:%s299] %v308
                  %v310 = vld [vmem:[%s306 + $0x8] sm:%s299]
                  %311 = vst [vmem:[%s307 + $0x4] sm:%s299] %v310
                  %v312 = vld [vmem:[%s306 + $0x10] sm:%s299]
                  %313 = vst [vmem:[%s307 + $0x8] sm:%s299] %v312
                  %v314 = vld [vmem:[%s306 + $0x18] sm:%s299]
                  %315 = vst [vmem:[%s307 + $0xc] sm:%s299] %v314
                  %v316 = vld [vmem:[%s306 + $0x20] sm:%s299]
                  %317 = vst [vmem:[%s307 + $0x10] sm:%s299] %v316
                  %v318 = vld [vmem:[%s306 + $0x28] sm:%s299]
                  %319 = vst [vmem:[%s307 + $0x14] sm:%s299] %v318
                  %v320 = vld [vmem:[%s306 + $0x30] sm:%s299]
                  %321 = vst [vmem:[%s307 + $0x18] sm:%s299] %v320
                  %v322 = vld [vmem:[%s306 + $0x38] sm:%s299]
                  %323 = vst [vmem:[%s307 + $0x1c] sm:%s299] %v322
                  %v324 = vld [vmem:[%s306 + $0x40] sm:%s299]
                  %325 = vst [vmem:[%s307 + $0x20] sm:%s299] %v324
                  %v326 = vld [vmem:[%s306 + $0x48] sm:%s299]
                  %327 = vst [vmem:[%s307 + $0x24] sm:%s299] %v326
                  %v328 = vld [vmem:[%s306 + $0x50] sm:%s299]
                  %329 = vst [vmem:[%s307 + $0x28] sm:%s299] %v328
                  %v330 = vld [vmem:[%s306 + $0x58] sm:%s299]
                  %331 = vst [vmem:[%s307 + $0x2c] sm:%s299] %v330
                  %v332 = vld [vmem:[%s306 + $0x60] sm:%s299]
                  %333 = vst [vmem:[%s307 + $0x30] sm:%s299] %v332
                  %v334 = vld [vmem:[%s306 + $0x68] sm:%s299]
                  %335 = vst [vmem:[%s307 + $0x34] sm:%s299] %v334
                  %v336 = vld [vmem:[%s306 + $0x70] sm:%s299]
                  %337 = vst [vmem:[%s307 + $0x38] sm:%s299] %v336
                  %v338 = vld [vmem:[%s306 + $0x78] sm:%s299]
                  %339 = vst [vmem:[%s307 + $0x3c] sm:%s299] %v338
                $region75: #{tpu_custom_call.1} parent=62 // loop_footer
                  %s305 = sadd.s32 1, %s301
                $region76: #{tpu_custom_call.1} parent=62 // loop_footer_branch
                  %300 = sbr.rel target = $region72
                $region77: #{tpu_custom_call.1} parent=62 // loop_exit
                  _
              $region63: #{tpu_custom_call.1} parent=47 // pred_fallthru
                _
            $region48: #{tpu_custom_call.1} parent=43 // pred_fallthru
              _
            // Predicated region
            $region49: #{tpu_custom_call.1} parent=43 // pred_check
              _
            $region50: #{tpu_custom_call.1} parent=43 // pred_check_branch
              %245 = sbr.rel (0) target = $region52
            $region51: #{tpu_custom_call.1} parent=43 // pred_region
              %s247 = ssub.s32 16, 1
              loop: start=0, step=1, limit=1
              $region53: #{tpu_custom_call.1} parent=51 // loop_pre_header
                _
              $region54: #{tpu_custom_call.1} parent=51 // loop_header
                %s249 = sphi 0, %s253
                %p250 = scmp.ge.s32.totalorder %s249, 1
                %s254 = sphi %s239, %s239
                %s255 = sphi %s234, %s234
              $region55: #{tpu_custom_call.1} parent=51 // loop_header_branch
                %252 = sbr.rel (%p250) target = $region59
              $region56: #{tpu_custom_call.1} parent=51 // loop_body
                %v256 = vld [vmem:[%s254] sm:%s247]
                %257 = vst [vmem:[%s255] sm:%s247] %v256
                %v258 = vld [vmem:[%s254 + $0x8] sm:%s247]
                %259 = vst [vmem:[%s255 + $0x4] sm:%s247] %v258
                %v260 = vld [vmem:[%s254 + $0x10] sm:%s247]
                %261 = vst [vmem:[%s255 + $0x8] sm:%s247] %v260
                %v262 = vld [vmem:[%s254 + $0x18] sm:%s247]
                %263 = vst [vmem:[%s255 + $0xc] sm:%s247] %v262
                %v264 = vld [vmem:[%s254 + $0x20] sm:%s247]
                %265 = vst [vmem:[%s255 + $0x10] sm:%s247] %v264
                %v266 = vld [vmem:[%s254 + $0x28] sm:%s247]
                %267 = vst [vmem:[%s255 + $0x14] sm:%s247] %v266
                %v268 = vld [vmem:[%s254 + $0x30] sm:%s247]
                %269 = vst [vmem:[%s255 + $0x18] sm:%s247] %v268
                %v270 = vld [vmem:[%s254 + $0x38] sm:%s247]
                %271 = vst [vmem:[%s255 + $0x1c] sm:%s247] %v270
                %v272 = vld [vmem:[%s254 + $0x40] sm:%s247]
                %273 = vst [vmem:[%s255 + $0x20] sm:%s247] %v272
                %v274 = vld [vmem:[%s254 + $0x48] sm:%s247]
                %275 = vst [vmem:[%s255 + $0x24] sm:%s247] %v274
                %v276 = vld [vmem:[%s254 + $0x50] sm:%s247]
                %277 = vst [vmem:[%s255 + $0x28] sm:%s247] %v276
                %v278 = vld [vmem:[%s254 + $0x58] sm:%s247]
                %279 = vst [vmem:[%s255 + $0x2c] sm:%s247] %v278
                %v280 = vld [vmem:[%s254 + $0x60] sm:%s247]
                %281 = vst [vmem:[%s255 + $0x30] sm:%s247] %v280
                %v282 = vld [vmem:[%s254 + $0x68] sm:%s247]
                %283 = vst [vmem:[%s255 + $0x34] sm:%s247] %v282
                %v284 = vld [vmem:[%s254 + $0x70] sm:%s247]
                %285 = vst [vmem:[%s255 + $0x38] sm:%s247] %v284
                %v286 = vld [vmem:[%s254 + $0x78] sm:%s247]
                %287 = vst [vmem:[%s255 + $0x3c] sm:%s247] %v286
              $region57: #{tpu_custom_call.1} parent=51 // loop_footer
                %s253 = sadd.s32 1, %s249
              $region58: #{tpu_custom_call.1} parent=51 // loop_footer_branch
                %248 = sbr.rel target = $region54
              $region59: #{tpu_custom_call.1} parent=51 // loop_exit
                _
            $region52: #{tpu_custom_call.1} parent=43 // pred_fallthru
              _
          $region44: #{tpu_custom_call.1} parent=39 // pred_fallthru
            _
          %340 = vnop
        $region40: #{tpu_custom_call.1} parent=35 // pred_fallthru
          _
      $region36: #{tpu_custom_call.1} parent=5 // pred_fallthru
        _
      %p341 = scmp.le.s32.totalorder 1, %s13
      %p342 = scmp.lt.s32.totalorder %s13, 5
      %p343 = pnand %p341, %p342
      %p344 = pneg %p343
      // Predicated region
      $region78: #{tpu_custom_call.1} parent=5 // pred_check
        _
      $region79: #{tpu_custom_call.1} parent=5 // pred_check_branch
        %346 = sbr.rel (%p343) target = $region81
      $region80: #{tpu_custom_call.1} parent=5 // pred_region
        %s347 = ssub.s32 %s13, 1
        %s348 = sand.u32 %s40, 1
        %s349 = sand.u32 %s40, 1
        %s350 = smul.addr %s349, 64
        %s351 = scalar_lea.vmem [#allocation2], %s350
        // Predicated region
        $region82: #{tpu_custom_call.1} parent=80 // pred_check
          %p352 = pneg %p53
        $region83: #{tpu_custom_call.1} parent=80 // pred_check_branch
          %354 = sbr.rel (%p352) target = $region85
        $region84: #{tpu_custom_call.1} parent=80 // pred_region
          _
        $region85: #{tpu_custom_call.1} parent=80 // pred_fallthru
          _
        // Predicated region
        $region86: #{tpu_custom_call.1} parent=80 // pred_check
          %p355 = pneg %p95
        $region87: #{tpu_custom_call.1} parent=80 // pred_check_branch
          %357 = sbr.rel (%p355) target = $region89
        $region88: #{tpu_custom_call.1} parent=80 // pred_region
          %358 = dma.done [#allocation4], 512
        $region89: #{tpu_custom_call.1} parent=80 // pred_fallthru
          _
        %s359 = sand.u32 %s40, 1
        %s360 = sand.u32 %s40, 1
        %s361 = smul.addr %s360, 64
        %s362 = scalar_lea.vmem [#allocation2], %s361
        %p363 = pneg %p53
        %p364 = pneg %p50
        %p365 = pneg %p74
        %p366 = pneg %p71
        %p367 = pneg %p95
        %p368 = pneg %p92
        %p369 = pneg %p116
        %p370 = pneg %p113
        %p371 = pneg %p137
        %p372 = pneg %p134
        %p373 = pneg %p158
        %p374 = pneg %p155
        %p375 = pneg %p184
        %p376 = pneg %p181
        %s377 = smul.u32 16, %s22
        %p378 = scmp.lt.s32.totalorder %s377, 31
        %s379 = scalar_select %p378, %s377, 31
        %s380 = smul.addr %s379, 8
        %s381 = scalar_lea.vmem %s6, %s380
        %s382 = smul.u32 16, %s22
        %s383 = smul.u32 16, %s22
        %p384 = scmp.lt.s32.totalorder %s383, 31
        %s385 = scalar_select %p384, %s383, 31
        %s386 = smul.addr %s385, 8
        %s387 = scalar_lea.vmem %s6, %s386
        %s388 = smul.u32 16, %s22
        %p390 = scmp.eq.s32.totalorder %s23, 0
        // Predicated region
        $region90: #{tpu_custom_call.1} parent=80 // pred_check
          %p391 = pneg %p390
        $region91: #{tpu_custom_call.1} parent=80 // pred_check_branch
          %393 = sbr.rel (%p391) target = $region93
        $region92: #{tpu_custom_call.1} parent=80 // pred_region
          %vm394 = vcmask 261120
          %395 = vst.msk [vmem:[%s387] sm:$0xff] %vm394, 0.0
          %396 = vst.msk [vmem:[%s387 + $0x8] sm:$0xff] %vm394, 0.0
          %397 = vst.msk [vmem:[%s387 + $0x10] sm:$0xff] %vm394, 0.0
          %398 = vst.msk [vmem:[%s387 + $0x18] sm:$0xff] %vm394, 0.0
          %399 = vst.msk [vmem:[%s387 + $0x20] sm:$0xff] %vm394, 0.0
          %400 = vst.msk [vmem:[%s387 + $0x28] sm:$0xff] %vm394, 0.0
          %401 = vst.msk [vmem:[%s387 + $0x30] sm:$0xff] %vm394, 0.0
          %402 = vst.msk [vmem:[%s387 + $0x38] sm:$0xff] %vm394, 0.0
          %403 = vst.msk [vmem:[%s387 + $0x40] sm:$0xff] %vm394, 0.0
          %404 = vst.msk [vmem:[%s387 + $0x48] sm:$0xff] %vm394, 0.0
          %405 = vst.msk [vmem:[%s387 + $0x50] sm:$0xff] %vm394, 0.0
          %406 = vst.msk [vmem:[%s387 + $0x58] sm:$0xff] %vm394, 0.0
          %407 = vst.msk [vmem:[%s387 + $0x60] sm:$0xff] %vm394, 0.0
          %408 = vst.msk [vmem:[%s387 + $0x68] sm:$0xff] %vm394, 0.0
          %409 = vst.msk [vmem:[%s387 + $0x70] sm:$0xff] %vm394, 0.0
          %410 = vst.msk [vmem:[%s387 + $0x78] sm:$0xff] %vm394, 0.0
        $region93: #{tpu_custom_call.1} parent=80 // pred_fallthru
          _
        %s411 = smul.u32 %s23, 128
        %s412 = sshra.s32 %s411, 3
        %s413 = sand.u32 %s411, 7
        %s414 = smul.addr %s412, 4
        %s415 = scalar_lea.vmem %s1, %s414
        %v416 = vld [vmem:[%s415] sm:$0xf]
        %v417 = vld [vmem:[%s415 + $0x4] sm:$0xf]
        %v418 = vld [vmem:[%s415 + $0x8] sm:$0xf]
        %v419 = vld [vmem:[%s415 + $0xc] sm:$0xf]
        %v420 = vld [vmem:[%s415 + $0x10] sm:$0xf]
        %v421 = vld [vmem:[%s415 + $0x14] sm:$0xf]
        %v422 = vld [vmem:[%s415 + $0x18] sm:$0xf]
        %v423 = vld [vmem:[%s415 + $0x1c] sm:$0xf]
        %v424 = vld [vmem:[%s415 + $0x20] sm:$0xf]
        %v425 = vld [vmem:[%s415 + $0x24] sm:$0xf]
        %v426 = vld [vmem:[%s415 + $0x28] sm:$0xf]
        %v427 = vld [vmem:[%s415 + $0x2c] sm:$0xf]
        %v428 = vld [vmem:[%s415 + $0x30] sm:$0xf]
        %v429 = vld [vmem:[%s415 + $0x34] sm:$0xf]
        %v430 = vld [vmem:[%s415 + $0x38] sm:$0xf]
        %v431 = vld [vmem:[%s415 + $0x3c] sm:$0xf]
        %v432 = vld [vmem:[%s387] sm:$0xff]
        %v433 = vld [vmem:[%s387 + $0x8] sm:$0xff]
        %v434 = vld [vmem:[%s387 + $0x10] sm:$0xff]
        %v435 = vld [vmem:[%s387 + $0x18] sm:$0xff]
        %v436 = vld [vmem:[%s387 + $0x20] sm:$0xff]
        %v437 = vld [vmem:[%s387 + $0x28] sm:$0xff]
        %v438 = vld [vmem:[%s387 + $0x30] sm:$0xff]
        %v439 = vld [vmem:[%s387 + $0x38] sm:$0xff]
        %v440 = vld [vmem:[%s387 + $0x40] sm:$0xff]
        %v441 = vld [vmem:[%s387 + $0x48] sm:$0xff]
        %v442 = vld [vmem:[%s387 + $0x50] sm:$0xff]
        %v443 = vld [vmem:[%s387 + $0x58] sm:$0xff]
        %v444 = vld [vmem:[%s387 + $0x60] sm:$0xff]
        %v445 = vld [vmem:[%s387 + $0x68] sm:$0xff]
        %v446 = vld [vmem:[%s387 + $0x70] sm:$0xff]
        %v447 = vld [vmem:[%s387 + $0x78] sm:$0xff]
        %v448 = vld [vmem:[%s351] sm:$0xf]
        %v449 = vld [vmem:[%s351 + $0x4] sm:$0xf]
        %v450 = vld [vmem:[%s351 + $0x8] sm:$0xf]
        %v451 = vld [vmem:[%s351 + $0xc] sm:$0xf]
        %v452 = vld [vmem:[%s351 + $0x10] sm:$0xf]
        %v453 = vld [vmem:[%s351 + $0x14] sm:$0xf]
        %v454 = vld [vmem:[%s351 + $0x18] sm:$0xf]
        %v455 = vld [vmem:[%s351 + $0x1c] sm:$0xf]
        %v456 = vld [vmem:[%s351 + $0x20] sm:$0xf]
        %v457 = vld [vmem:[%s351 + $0x24] sm:$0xf]
        %v458 = vld [vmem:[%s351 + $0x28] sm:$0xf]
        %v459 = vld [vmem:[%s351 + $0x2c] sm:$0xf]
        %v460 = vld [vmem:[%s351 + $0x30] sm:$0xf]
        %v461 = vld [vmem:[%s351 + $0x34] sm:$0xf]
        %v462 = vld [vmem:[%s351 + $0x38] sm:$0xf]
        %v463 = vld [vmem:[%s351 + $0x3c] sm:$0xf]
        %v480 = vunpack.c.l.b16 %v448
        %v481 = vunpack.c.l.b16 %v449
        %v482 = vunpack.c.l.b16 %v450
        %v483 = vunpack.c.l.b16 %v451
        %v484 = vunpack.c.l.b16 %v452
        %v485 = vunpack.c.l.b16 %v453
        %v486 = vunpack.c.l.b16 %v454
        %v487 = vunpack.c.l.b16 %v455
        %v488 = vunpack.c.l.b16 %v456
        %v489 = vunpack.c.l.b16 %v457
        %v490 = vunpack.c.l.b16 %v458
        %v491 = vunpack.c.l.b16 %v459
        %v492 = vunpack.c.l.b16 %v460
        %v493 = vunpack.c.l.b16 %v461
        %v494 = vunpack.c.l.b16 %v462
        %v495 = vunpack.c.l.b16 %v463
        %v496 = vpack.c.b16 %v481, %v480
        %v497 = vpack.c.b16 %v483, %v482
        %v498 = vpack.c.b16 %v485, %v484
        %v499 = vpack.c.b16 %v487, %v486
        %v500 = vpack.c.b16 %v489, %v488
        %v501 = vpack.c.b16 %v491, %v490
        %v502 = vpack.c.b16 %v493, %v492
        %v503 = vpack.c.b16 %v495, %v494
        %v528 = vunpack.c.l.b16 %v416
        %v529 = vunpack.c.l.b16 %v417
        %v530 = vunpack.c.l.b16 %v418
        %v531 = vunpack.c.l.b16 %v419
        %v532 = vunpack.c.l.b16 %v420
        %v533 = vunpack.c.l.b16 %v421
        %v534 = vunpack.c.l.b16 %v422
        %v535 = vunpack.c.l.b16 %v423
        %v536 = vunpack.c.l.b16 %v424
        %v537 = vunpack.c.l.b16 %v425
        %v538 = vunpack.c.l.b16 %v426
        %v539 = vunpack.c.l.b16 %v427
        %v540 = vunpack.c.l.b16 %v428
        %v541 = vunpack.c.l.b16 %v429
        %v542 = vunpack.c.l.b16 %v430
        %v543 = vunpack.c.l.b16 %v431
        %v544 = vpack.c.b16 %v529, %v528
        %v545 = vpack.c.b16 %v531, %v530
        %v546 = vpack.c.b16 %v533, %v532
        %v547 = vpack.c.b16 %v535, %v534
        %v548 = vpack.c.b16 %v537, %v536
        %v549 = vpack.c.b16 %v539, %v538
        %v550 = vpack.c.b16 %v541, %v540
        %v551 = vpack.c.b16 %v543, %v542
        %560 = vmatprep.subr.bf16.mxu0 0
        %561 = vmatpush1.bf16.msra.mxu0 %v551
        %562 = vmatprep.subr.bf16.mxu0 0
        %563 = vmatpush1.bf16.msra.mxu0 %v550
        %564 = vmatprep.subr.bf16.mxu0 0
        %565 = vmatpush1.bf16.msra.mxu0 %v549
        %566 = vmatprep.subr.bf16.mxu0 0
        %567 = vmatpush1.bf16.msra.mxu0 %v548
        %568 = vmatprep.subr.bf16.mxu0 0
        %569 = vmatpush1.bf16.msra.mxu0 %v547
        %570 = vmatprep.subr.bf16.mxu0 0
        %571 = vmatpush1.bf16.msra.mxu0 %v546
        %572 = vmatprep.subr.bf16.mxu0 0
        %573 = vmatpush1.bf16.msra.mxu0 %v545
        %574 = vmatprep.subr.bf16.mxu0 0
        %575 = vmatpush1.bf16.msra.mxu0 %v544
        %576 = vmatprep.subr.bf16.mxu0 0
        %577 = vmatpush2.bf16.msra.mxu0 0
        %578 = vmatprep.subr.bf16.mxu0 0
        %579 = vmatpush2.bf16.msra.mxu0 0
        %580 = vmatprep.subr.bf16.mxu0 0
        %581 = vmatpush2.bf16.msra.mxu0 0
        %582 = vmatprep.subr.bf16.mxu0 0
        %583 = vmatpush2.bf16.msra.mxu0 0
        %584 = vmatprep.subr.bf16.mxu0 0
        %585 = vmatpush2.bf16.msra.mxu0 0
        %586 = vmatprep.subr.bf16.mxu0 0
        %587 = vmatpush2.bf16.msra.mxu0 0
        %588 = vmatprep.subr.bf16.mxu0 0
        %589 = vmatpush2.bf16.msra.mxu0 0
        %590 = vmatprep.subr.bf16.mxu0 0
        %591 = vmatpush2.bf16.msra.mxu0 0
        %592 = vmatprep.mubr.bf16.mxu0 0
        %593 = vmatmul.mubr.bf16.gmra.mxu0 %v496
        %v594 = vpop.f32.mrf.mxu0
        %v595 = vadd.f32 0.0, %v594
        %v596 = vpop.f32.mrf.mxu0
        %v597 = vpop.f32.mrf.mxu0
        %v598 = vadd.f32 0.0, %v597
        %v599 = vpop.f32.mrf.mxu0
        %600 = vmatprep.mubr.bf16.mxu0 0
        %601 = vmatmul.mubr.bf16.gmra.mxu0 %v497
        %v602 = vpop.f32.mrf.mxu0
        %v603 = vadd.f32 0.0, %v602
        %v604 = vpop.f32.mrf.mxu0
        %v605 = vpop.f32.mrf.mxu0
        %v606 = vadd.f32 0.0, %v605
        %v607 = vpop.f32.mrf.mxu0
        %608 = vmatprep.mubr.bf16.mxu0 0
        %609 = vmatmul.mubr.bf16.gmra.mxu0 %v498
        %v610 = vpop.f32.mrf.mxu0
        %v611 = vadd.f32 0.0, %v610
        %v612 = vpop.f32.mrf.mxu0
        %v613 = vpop.f32.mrf.mxu0
        %v614 = vadd.f32 0.0, %v613
        %v615 = vpop.f32.mrf.mxu0
        %616 = vmatprep.mubr.bf16.mxu0 0
        %617 = vmatmul.mubr.bf16.gmra.mxu0 %v499
        %v618 = vpop.f32.mrf.mxu0
        %v619 = vadd.f32 0.0, %v618
        %v620 = vpop.f32.mrf.mxu0
        %v621 = vpop.f32.mrf.mxu0
        %v622 = vadd.f32 0.0, %v621
        %v623 = vpop.f32.mrf.mxu0
        %624 = vmatprep.mubr.bf16.mxu0 0
        %625 = vmatmul.mubr.bf16.gmra.mxu0 %v500
        %v626 = vpop.f32.mrf.mxu0
        %v627 = vadd.f32 0.0, %v626
        %v628 = vpop.f32.mrf.mxu0
        %v629 = vpop.f32.mrf.mxu0
        %v630 = vadd.f32 0.0, %v629
        %v631 = vpop.f32.mrf.mxu0
        %632 = vmatprep.mubr.bf16.mxu0 0
        %633 = vmatmul.mubr.bf16.gmra.mxu0 %v501
        %v634 = vpop.f32.mrf.mxu0
        %v635 = vadd.f32 0.0, %v634
        %v636 = vpop.f32.mrf.mxu0
        %v637 = vpop.f32.mrf.mxu0
        %v638 = vadd.f32 0.0, %v637
        %v639 = vpop.f32.mrf.mxu0
        %640 = vmatprep.mubr.bf16.mxu0 0
        %641 = vmatmul.mubr.bf16.gmra.mxu0 %v502
        %v642 = vpop.f32.mrf.mxu0
        %v643 = vadd.f32 0.0, %v642
        %v644 = vpop.f32.mrf.mxu0
        %v645 = vpop.f32.mrf.mxu0
        %v646 = vadd.f32 0.0, %v645
        %v647 = vpop.f32.mrf.mxu0
        %648 = vmatprep.mubr.bf16.mxu0 0
        %649 = vmatmul.mubr.bf16.gmra.mxu0 %v503
        %v650 = vpop.f32.mrf.mxu0
        %v651 = vadd.f32 0.0, %v650
        %v652 = vpop.f32.mrf.mxu0
        %v653 = vpop.f32.mrf.mxu0
        %v654 = vadd.f32 0.0, %v653
        %v655 = vpop.f32.mrf.mxu0
        %656 = vdwg.mxu0
        %v657 = vadd.f32 %v432, %v595
        %v658 = vadd.f32 %v433, %v598
        %v659 = vadd.f32 %v434, %v603
        %v660 = vadd.f32 %v435, %v606
        %v661 = vadd.f32 %v436, %v611
        %v662 = vadd.f32 %v437, %v614
        %v663 = vadd.f32 %v438, %v619
        %v664 = vadd.f32 %v439, %v622
        %v665 = vadd.f32 %v440, %v627
        %v666 = vadd.f32 %v441, %v630
        %v667 = vadd.f32 %v442, %v635
        %v668 = vadd.f32 %v443, %v638
        %v669 = vadd.f32 %v444, %v643
        %v670 = vadd.f32 %v445, %v646
        %v671 = vadd.f32 %v446, %v651
        %v672 = vadd.f32 %v447, %v654
        %vm673 = vcmask 261120
        %674 = vst.msk [vmem:[%s387] sm:$0xff] %vm673, %v657
        %675 = vst.msk [vmem:[%s387 + $0x8] sm:$0xff] %vm673, %v658
        %676 = vst.msk [vmem:[%s387 + $0x10] sm:$0xff] %vm673, %v659
        %677 = vst.msk [vmem:[%s387 + $0x18] sm:$0xff] %vm673, %v660
        %678 = vst.msk [vmem:[%s387 + $0x20] sm:$0xff] %vm673, %v661
        %679 = vst.msk [vmem:[%s387 + $0x28] sm:$0xff] %vm673, %v662
        %680 = vst.msk [vmem:[%s387 + $0x30] sm:$0xff] %vm673, %v663
        %681 = vst.msk [vmem:[%s387 + $0x38] sm:$0xff] %vm673, %v664
        %682 = vst.msk [vmem:[%s387 + $0x40] sm:$0xff] %vm673, %v665
        %683 = vst.msk [vmem:[%s387 + $0x48] sm:$0xff] %vm673, %v666
        %684 = vst.msk [vmem:[%s387 + $0x50] sm:$0xff] %vm673, %v667
        %685 = vst.msk [vmem:[%s387 + $0x58] sm:$0xff] %vm673, %v668
        %686 = vst.msk [vmem:[%s387 + $0x60] sm:$0xff] %vm673, %v669
        %687 = vst.msk [vmem:[%s387 + $0x68] sm:$0xff] %vm673, %v670
        %688 = vst.msk [vmem:[%s387 + $0x70] sm:$0xff] %vm673, %v671
        %689 = vst.msk [vmem:[%s387 + $0x78] sm:$0xff] %vm673, %v672
        %p690 = scmp.eq.s32.totalorder %s23, 1
        // Predicated region
        $region94: #{tpu_custom_call.1} parent=80 // pred_check
          %p691 = pneg %p690
        $region95: #{tpu_custom_call.1} parent=80 // pred_check_branch
          %693 = sbr.rel (%p691) target = $region97
        $region96: #{tpu_custom_call.1} parent=80 // pred_region
          %v694 = vld [vmem:[%s387] sm:$0xff]
          %v695 = vld [vmem:[%s387 + $0x8] sm:$0xff]
          %v696 = vld [vmem:[%s387 + $0x10] sm:$0xff]
          %v697 = vld [vmem:[%s387 + $0x18] sm:$0xff]
          %v698 = vld [vmem:[%s387 + $0x20] sm:$0xff]
          %v699 = vld [vmem:[%s387 + $0x28] sm:$0xff]
          %v700 = vld [vmem:[%s387 + $0x30] sm:$0xff]
          %v701 = vld [vmem:[%s387 + $0x38] sm:$0xff]
          %v702 = vld [vmem:[%s387 + $0x40] sm:$0xff]
          %v703 = vld [vmem:[%s387 + $0x48] sm:$0xff]
          %v704 = vld [vmem:[%s387 + $0x50] sm:$0xff]
          %v705 = vld [vmem:[%s387 + $0x58] sm:$0xff]
          %v706 = vld [vmem:[%s387 + $0x60] sm:$0xff]
          %v707 = vld [vmem:[%s387 + $0x68] sm:$0xff]
          %v708 = vld [vmem:[%s387 + $0x70] sm:$0xff]
          %v709 = vld [vmem:[%s387 + $0x78] sm:$0xff]
          %v710 = vld [vmem:[#allocation3] sm:$0xff]
          %v711 = vld [vmem:[#allocation3 + $0x8] sm:$0xff]
          %v712 = vld [vmem:[#allocation3 + $0x10] sm:$0xff]
          %v713 = vld [vmem:[#allocation3 + $0x18] sm:$0xff]
          %v714 = vld [vmem:[%s3] sm:$0x1]
          %v716 = vlaneseq
          %v717 = vshrl.u32 %v716, 7
          %v718 = vsub.s32 0, %v717
          %v719 = vrot.slane %v714, %v718
          %v722 = vsel %vm673, %v694, 0
          %v725 = vsel %vm673, %v695, 0
          %v728 = vsel %vm673, %v696, 0
          %v731 = vsel %vm673, %v697, 0
          %v734 = vsel %vm673, %v698, 0
          %v737 = vsel %vm673, %v699, 0
          %v740 = vsel %vm673, %v700, 0
          %v743 = vsel %vm673, %v701, 0
          %v746 = vsel %vm673, %v702, 0
          %v749 = vsel %vm673, %v703, 0
          %v752 = vsel %vm673, %v704, 0
          %v755 = vsel %vm673, %v705, 0
          %v758 = vsel %vm673, %v706, 0
          %v761 = vsel %vm673, %v707, 0
          %v764 = vsel %vm673, %v708, 0
          %v767 = vsel %vm673, %v709, 0
          %769 = vmatprep.subr.mxu0 0.0
          %770 = vmatpush1.msra.mxu0 0.0
          %771 = vmatprep.subr.mxu0 0.0
          %772 = vmatpush1.msra.mxu0 0.0
          %773 = vmatprep.subr.mxu0 0.0
          %774 = vmatpush1.msra.mxu0 0.0
          %775 = vmatprep.subr.mxu0 0.0
          %776 = vmatpush1.msra.mxu0 0.0
          %777 = vmatprep.subr.mxu0 0.0
          %778 = vmatpush1.msra.mxu0 0.0
          %779 = vmatprep.subr.mxu0 0.0
          %780 = vmatpush1.msra.mxu0 0.0
          %781 = vmatprep.subr.mxu0 0.0
          %782 = vmatpush1.msra.mxu0 0.0
          %783 = vmatprep.subr.mxu0 0.0
          %784 = vmatpush1.msra.mxu0 0.0
          %785 = vmatprep.subr.mxu0 0.0
          %786 = vmatpush1.msra.mxu0 0.0
          %787 = vmatprep.subr.mxu0 0.0
          %788 = vmatpush1.msra.mxu0 0.0
          %789 = vmatprep.subr.mxu0 0.0
          %790 = vmatpush1.msra.mxu0 0.0
          %791 = vmatprep.subr.mxu0 0.0
          %792 = vmatpush1.msra.mxu0 0.0
          %793 = vmatprep.subr.mxu0 0.0
          %794 = vmatpush1.msra.mxu0 %v713
          %795 = vmatprep.subr.mxu0 0.0
          %796 = vmatpush1.msra.mxu0 %v712
          %797 = vmatprep.subr.mxu0 0.0
          %798 = vmatpush1.msra.mxu0 %v711
          %799 = vmatprep.subr.mxu0 0.0
          %800 = vmatpush1.msra.mxu0 %v710
          %801 = vmatprep.subr.mxu0 0.0
          %802 = vmatpush2.msra.mxu0 0.0
          %803 = vmatprep.subr.mxu0 0.0
          %804 = vmatpush2.msra.mxu0 0.0
          %805 = vmatprep.subr.mxu0 0.0
          %806 = vmatpush2.msra.mxu0 0.0
          %807 = vmatprep.subr.mxu0 0.0
          %808 = vmatpush2.msra.mxu0 0.0
          %809 = vmatprep.subr.mxu0 0.0
          %810 = vmatpush2.msra.mxu0 0.0
          %811 = vmatprep.subr.mxu0 0.0
          %812 = vmatpush2.msra.mxu0 0.0
          %813 = vmatprep.subr.mxu0 0.0
          %814 = vmatpush2.msra.mxu0 0.0
          %815 = vmatprep.subr.mxu0 0.0
          %816 = vmatpush2.msra.mxu0 0.0
          %817 = vmatprep.subr.mxu0 0.0
          %818 = vmatpush2.msra.mxu0 0.0
          %819 = vmatprep.subr.mxu0 0.0
          %820 = vmatpush2.msra.mxu0 0.0
          %821 = vmatprep.subr.mxu0 0.0
          %822 = vmatpush2.msra.mxu0 0.0
          %823 = vmatprep.subr.mxu0 0.0
          %824 = vmatpush2.msra.mxu0 0.0
          %825 = vmatprep.subr.mxu0 0.0
          %826 = vmatpush2.msra.mxu0 0.0
          %827 = vmatprep.subr.mxu0 0.0
          %828 = vmatpush2.msra.mxu0 0.0
          %829 = vmatprep.subr.mxu0 0.0
          %830 = vmatpush2.msra.mxu0 0.0
          %831 = vmatprep.subr.mxu0 0.0
          %832 = vmatpush2.msra.mxu0 0.0
          %833 = vmatprep.mubr.f32.mxu0 0.0
          %834 = vmatmul.mubr.f32.gmra.mxu0 %v722
          %v835 = vpop.f32.mrf.mxu0
          %v836 = vadd.f32 %v719, %v835
          %v837 = vpop.f32.mrf.mxu0
          %838 = vmatprep.mubr.f32.mxu0 0.0
          %839 = vmatmul.mubr.f32.gmra.mxu0 %v725
          %v840 = vpop.f32.mrf.mxu0
          %v841 = vadd.f32 %v719, %v840
          %v842 = vpop.f32.mrf.mxu0
          %843 = vmatprep.mubr.f32.mxu0 0.0
          %844 = vmatmul.mubr.f32.gmra.mxu0 %v728
          %v845 = vpop.f32.mrf.mxu0
          %v846 = vadd.f32 %v719, %v845
          %v847 = vpop.f32.mrf.mxu0
          %848 = vmatprep.mubr.f32.mxu0 0.0
          %849 = vmatmul.mubr.f32.gmra.mxu0 %v731
          %v850 = vpop.f32.mrf.mxu0
          %v851 = vadd.f32 %v719, %v850
          %v852 = vpop.f32.mrf.mxu0
          %853 = vmatprep.mubr.f32.mxu0 0.0
          %854 = vmatmul.mubr.f32.gmra.mxu0 %v734
          %v855 = vpop.f32.mrf.mxu0
          %v856 = vadd.f32 %v719, %v855
          %v857 = vpop.f32.mrf.mxu0
          %858 = vmatprep.mubr.f32.mxu0 0.0
          %859 = vmatmul.mubr.f32.gmra.mxu0 %v737
          %v860 = vpop.f32.mrf.mxu0
          %v861 = vadd.f32 %v719, %v860
          %v862 = vpop.f32.mrf.mxu0
          %863 = vmatprep.mubr.f32.mxu0 0.0
          %864 = vmatmul.mubr.f32.gmra.mxu0 %v740
          %v865 = vpop.f32.mrf.mxu0
          %v866 = vadd.f32 %v719, %v865
          %v867 = vpop.f32.mrf.mxu0
          %868 = vmatprep.mubr.f32.mxu0 0.0
          %869 = vmatmul.mubr.f32.gmra.mxu0 %v743
          %v870 = vpop.f32.mrf.mxu0
          %v871 = vadd.f32 %v719, %v870
          %v872 = vpop.f32.mrf.mxu0
          %873 = vmatprep.mubr.f32.mxu0 0.0
          %874 = vmatmul.mubr.f32.gmra.mxu0 %v746
          %v875 = vpop.f32.mrf.mxu0
          %v876 = vadd.f32 %v719, %v875
          %v877 = vpop.f32.mrf.mxu0
          %878 = vmatprep.mubr.f32.mxu0 0.0
          %879 = vmatmul.mubr.f32.gmra.mxu0 %v749
          %v880 = vpop.f32.mrf.mxu0
          %v881 = vadd.f32 %v719, %v880
          %v882 = vpop.f32.mrf.mxu0
          %883 = vmatprep.mubr.f32.mxu0 0.0
          %884 = vmatmul.mubr.f32.gmra.mxu0 %v752
          %v885 = vpop.f32.mrf.mxu0
          %v886 = vadd.f32 %v719, %v885
          %v887 = vpop.f32.mrf.mxu0
          %888 = vmatprep.mubr.f32.mxu0 0.0
          %889 = vmatmul.mubr.f32.gmra.mxu0 %v755
          %v890 = vpop.f32.mrf.mxu0
          %v891 = vadd.f32 %v719, %v890
          %v892 = vpop.f32.mrf.mxu0
          %893 = vmatprep.mubr.f32.mxu0 0.0
          %894 = vmatmul.mubr.f32.gmra.mxu0 %v758
          %v895 = vpop.f32.mrf.mxu0
          %v896 = vadd.f32 %v719, %v895
          %v897 = vpop.f32.mrf.mxu0
          %898 = vmatprep.mubr.f32.mxu0 0.0
          %899 = vmatmul.mubr.f32.gmra.mxu0 %v761
          %v900 = vpop.f32.mrf.mxu0
          %v901 = vadd.f32 %v719, %v900
          %v902 = vpop.f32.mrf.mxu0
          %903 = vmatprep.mubr.f32.mxu0 0.0
          %904 = vmatmul.mubr.f32.gmra.mxu0 %v764
          %v905 = vpop.f32.mrf.mxu0
          %v906 = vadd.f32 %v719, %v905
          %v907 = vpop.f32.mrf.mxu0
          %908 = vmatprep.mubr.f32.mxu0 0.0
          %909 = vmatmul.mubr.f32.gmra.mxu0 %v767
          %v910 = vpop.f32.mrf.mxu0
          %v911 = vadd.f32 %v719, %v910
          %v912 = vpop.f32.mrf.mxu0
          %913 = vdwg.mxu0
          %v914 = vld [vmem:[%s4] sm:$0xff]
          %v915 = vld [vmem:[%s4 + $0x8] sm:$0xff]
          %v916 = vld [vmem:[%s4 + $0x10] sm:$0xff]
          %v917 = vld [vmem:[%s4 + $0x18] sm:$0xff]
          %v918 = vld [vmem:[%s4 + $0x20] sm:$0xff]
          %v919 = vld [vmem:[%s4 + $0x28] sm:$0xff]
          %v920 = vld [vmem:[%s4 + $0x30] sm:$0xff]
          %v921 = vld [vmem:[%s4 + $0x38] sm:$0xff]
          %v922 = vld [vmem:[%s5] sm:$0x1]
          %v924 = vlaneseq
          %v925 = vshrl.u32 %v924, 7
          %v926 = vsub.s32 0, %v925
          %v927 = vrot.slane %v922, %v926
          %vm929 = vcmask 523264
          %v931 = vsel %vm929, %v836, 0
          %v934 = vsel %vm929, %v841, 0
          %v937 = vsel %vm929, %v846, 0
          %v940 = vsel %vm929, %v851, 0
          %v943 = vsel %vm929, %v856, 0
          %v946 = vsel %vm929, %v861, 0
          %v949 = vsel %vm929, %v866, 0
          %v952 = vsel %vm929, %v871, 0
          %v955 = vsel %vm929, %v876, 0
          %v958 = vsel %vm929, %v881, 0
          %v961 = vsel %vm929, %v886, 0
          %v964 = vsel %vm929, %v891, 0
          %v967 = vsel %vm929, %v896, 0
          %v970 = vsel %vm929, %v901, 0
          %v973 = vsel %vm929, %v906, 0
          %v976 = vsel %vm929, %v911, 0
          %978 = vmatprep.subr.mxu0 0.0
          %979 = vmatpush1.msra.mxu0 0.0
          %980 = vmatprep.subr.mxu0 0.0
          %981 = vmatpush1.msra.mxu0 0.0
          %982 = vmatprep.subr.mxu0 0.0
          %983 = vmatpush1.msra.mxu0 0.0
          %984 = vmatprep.subr.mxu0 0.0
          %985 = vmatpush1.msra.mxu0 0.0
          %986 = vmatprep.subr.mxu0 0.0
          %987 = vmatpush1.msra.mxu0 0.0
          %988 = vmatprep.subr.mxu0 0.0
          %989 = vmatpush1.msra.mxu0 0.0
          %990 = vmatprep.subr.mxu0 0.0
          %991 = vmatpush1.msra.mxu0 0.0
          %992 = vmatprep.subr.mxu0 0.0
          %993 = vmatpush1.msra.mxu0 0.0
          %994 = vmatprep.subr.mxu0 0.0
          %995 = vmatpush1.msra.mxu0 %v921
          %996 = vmatprep.subr.mxu0 0.0
          %997 = vmatpush1.msra.mxu0 %v920
          %998 = vmatprep.subr.mxu0 0.0
          %999 = vmatpush1.msra.mxu0 %v919
          %1000 = vmatprep.subr.mxu0 0.0
          %1001 = vmatpush1.msra.mxu0 %v918
          %1002 = vmatprep.subr.mxu0 0.0
          %1003 = vmatpush1.msra.mxu0 %v917
          %1004 = vmatprep.subr.mxu0 0.0
          %1005 = vmatpush1.msra.mxu0 %v916
          %1006 = vmatprep.subr.mxu0 0.0
          %1007 = vmatpush1.msra.mxu0 %v915
          %1008 = vmatprep.subr.mxu0 0.0
          %1009 = vmatpush1.msra.mxu0 %v914
          %1010 = vmatprep.subr.mxu0 0.0
          %1011 = vmatpush2.msra.mxu0 0.0
          %1012 = vmatprep.subr.mxu0 0.0
          %1013 = vmatpush2.msra.mxu0 0.0
          %1014 = vmatprep.subr.mxu0 0.0
          %1015 = vmatpush2.msra.mxu0 0.0
          %1016 = vmatprep.subr.mxu0 0.0
          %1017 = vmatpush2.msra.mxu0 0.0
          %1018 = vmatprep.subr.mxu0 0.0
          %1019 = vmatpush2.msra.mxu0 0.0
          %1020 = vmatprep.subr.mxu0 0.0
          %1021 = vmatpush2.msra.mxu0 0.0
          %1022 = vmatprep.subr.mxu0 0.0
          %1023 = vmatpush2.msra.mxu0 0.0
          %1024 = vmatprep.subr.mxu0 0.0
          %1025 = vmatpush2.msra.mxu0 0.0
          %1026 = vmatprep.subr.mxu0 0.0
          %1027 = vmatpush2.msra.mxu0 0.0
          %1028 = vmatprep.subr.mxu0 0.0
          %1029 = vmatpush2.msra.mxu0 0.0
          %1030 = vmatprep.subr.mxu0 0.0
          %1031 = vmatpush2.msra.mxu0 0.0
          %1032 = vmatprep.subr.mxu0 0.0
          %1033 = vmatpush2.msra.mxu0 0.0
          %1034 = vmatprep.subr.mxu0 0.0
          %1035 = vmatpush2.msra.mxu0 0.0
          %1036 = vmatprep.subr.mxu0 0.0
          %1037 = vmatpush2.msra.mxu0 0.0
          %1038 = vmatprep.subr.mxu0 0.0
          %1039 = vmatpush2.msra.mxu0 0.0
          %1040 = vmatprep.subr.mxu0 0.0
          %1041 = vmatpush2.msra.mxu0 0.0
          %1042 = vmatprep.mubr.f32.mxu0 0.0
          %1043 = vmatmul.mubr.f32.gmra.mxu0 %v931
          %v1044 = vpop.f32.mrf.mxu0
          %v1045 = vadd.f32 %v927, %v1044
          %v1046 = vpop.f32.mrf.mxu0
          %1047 = vmatprep.mubr.f32.mxu0 0.0
          %1048 = vmatmul.mubr.f32.gmra.mxu0 %v934
          %v1049 = vpop.f32.mrf.mxu0
          %v1050 = vadd.f32 %v927, %v1049
          %v1051 = vpop.f32.mrf.mxu0
          %1052 = vmatprep.mubr.f32.mxu0 0.0
          %1053 = vmatmul.mubr.f32.gmra.mxu0 %v937
          %v1054 = vpop.f32.mrf.mxu0
          %v1055 = vadd.f32 %v927, %v1054
          %v1056 = vpop.f32.mrf.mxu0
          %1057 = vmatprep.mubr.f32.mxu0 0.0
          %1058 = vmatmul.mubr.f32.gmra.mxu0 %v940
          %v1059 = vpop.f32.mrf.mxu0
          %v1060 = vadd.f32 %v927, %v1059
          %v1061 = vpop.f32.mrf.mxu0
          %1062 = vmatprep.mubr.f32.mxu0 0.0
          %1063 = vmatmul.mubr.f32.gmra.mxu0 %v943
          %v1064 = vpop.f32.mrf.mxu0
          %v1065 = vadd.f32 %v927, %v1064
          %v1066 = vpop.f32.mrf.mxu0
          %1067 = vmatprep.mubr.f32.mxu0 0.0
          %1068 = vmatmul.mubr.f32.gmra.mxu0 %v946
          %v1069 = vpop.f32.mrf.mxu0
          %v1070 = vadd.f32 %v927, %v1069
          %v1071 = vpop.f32.mrf.mxu0
          %1072 = vmatprep.mubr.f32.mxu0 0.0
          %1073 = vmatmul.mubr.f32.gmra.mxu0 %v949
          %v1074 = vpop.f32.mrf.mxu0
          %v1075 = vadd.f32 %v927, %v1074
          %v1076 = vpop.f32.mrf.mxu0
          %1077 = vmatprep.mubr.f32.mxu0 0.0
          %1078 = vmatmul.mubr.f32.gmra.mxu0 %v952
          %v1079 = vpop.f32.mrf.mxu0
          %v1080 = vadd.f32 %v927, %v1079
          %v1081 = vpop.f32.mrf.mxu0
          %1082 = vmatprep.mubr.f32.mxu0 0.0
          %1083 = vmatmul.mubr.f32.gmra.mxu0 %v955
          %v1084 = vpop.f32.mrf.mxu0
          %v1085 = vadd.f32 %v927, %v1084
          %v1086 = vpop.f32.mrf.mxu0
          %1087 = vmatprep.mubr.f32.mxu0 0.0
          %1088 = vmatmul.mubr.f32.gmra.mxu0 %v958
          %v1089 = vpop.f32.mrf.mxu0
          %v1090 = vadd.f32 %v927, %v1089
          %v1091 = vpop.f32.mrf.mxu0
          %1092 = vmatprep.mubr.f32.mxu0 0.0
          %1093 = vmatmul.mubr.f32.gmra.mxu0 %v961
          %v1094 = vpop.f32.mrf.mxu0
          %v1095 = vadd.f32 %v927, %v1094
          %v1096 = vpop.f32.mrf.mxu0
          %1097 = vmatprep.mubr.f32.mxu0 0.0
          %1098 = vmatmul.mubr.f32.gmra.mxu0 %v964
          %v1099 = vpop.f32.mrf.mxu0
          %v1100 = vadd.f32 %v927, %v1099
          %v1101 = vpop.f32.mrf.mxu0
          %1102 = vmatprep.mubr.f32.mxu0 0.0
          %1103 = vmatmul.mubr.f32.gmra.mxu0 %v967
          %v1104 = vpop.f32.mrf.mxu0
          %v1105 = vadd.f32 %v927, %v1104
          %v1106 = vpop.f32.mrf.mxu0
          %1107 = vmatprep.mubr.f32.mxu0 0.0
          %1108 = vmatmul.mubr.f32.gmra.mxu0 %v970
          %v1109 = vpop.f32.mrf.mxu0
          %v1110 = vadd.f32 %v927, %v1109
          %v1111 = vpop.f32.mrf.mxu0
          %1112 = vmatprep.mubr.f32.mxu0 0.0
          %1113 = vmatmul.mubr.f32.gmra.mxu0 %v973
          %v1114 = vpop.f32.mrf.mxu0
          %v1115 = vadd.f32 %v927, %v1114
          %v1116 = vpop.f32.mrf.mxu0
          %1117 = vmatprep.mubr.f32.mxu0 0.0
          %1118 = vmatmul.mubr.f32.gmra.mxu0 %v976
          %v1119 = vpop.f32.mrf.mxu0
          %v1120 = vadd.f32 %v927, %v1119
          %v1121 = vpop.f32.mrf.mxu0
          %1122 = vdwg.mxu0
          %1123 = vst.msk [vmem:[%s387] sm:$0xff] %vm673, %v1045
          %1124 = vst.msk [vmem:[%s387 + $0x8] sm:$0xff] %vm673, %v1050
          %1125 = vst.msk [vmem:[%s387 + $0x10] sm:$0xff] %vm673, %v1055
          %1126 = vst.msk [vmem:[%s387 + $0x18] sm:$0xff] %vm673, %v1060
          %1127 = vst.msk [vmem:[%s387 + $0x20] sm:$0xff] %vm673, %v1065
          %1128 = vst.msk [vmem:[%s387 + $0x28] sm:$0xff] %vm673, %v1070
          %1129 = vst.msk [vmem:[%s387 + $0x30] sm:$0xff] %vm673, %v1075
          %1130 = vst.msk [vmem:[%s387 + $0x38] sm:$0xff] %vm673, %v1080
          %1131 = vst.msk [vmem:[%s387 + $0x40] sm:$0xff] %vm673, %v1085
          %1132 = vst.msk [vmem:[%s387 + $0x48] sm:$0xff] %vm673, %v1090
          %1133 = vst.msk [vmem:[%s387 + $0x50] sm:$0xff] %vm673, %v1095
          %1134 = vst.msk [vmem:[%s387 + $0x58] sm:$0xff] %vm673, %v1100
          %1135 = vst.msk [vmem:[%s387 + $0x60] sm:$0xff] %vm673, %v1105
          %1136 = vst.msk [vmem:[%s387 + $0x68] sm:$0xff] %vm673, %v1110
          %1137 = vst.msk [vmem:[%s387 + $0x70] sm:$0xff] %vm673, %v1115
          %1138 = vst.msk [vmem:[%s387 + $0x78] sm:$0xff] %vm673, %v1120
        $region97: #{tpu_custom_call.1} parent=80 // pred_fallthru
          _
        %s1139 = smul.u32 16, %s22
        %p1140 = scmp.lt.s32.totalorder %s1139, 31
        %s1141 = scalar_select %p1140, %s1139, 31
        %s1142 = smul.addr %s1141, 8
        %s1143 = scalar_lea.vmem %s6, %s1142
        // Predicated region
        $region98: #{tpu_custom_call.1} parent=80 // pred_check
          %p1144 = pneg %p181
        $region99: #{tpu_custom_call.1} parent=80 // pred_check_branch
          %1146 = sbr.rel (%p1144) target = $region101
        $region100: #{tpu_custom_call.1} parent=80 // pred_region
          %s1147 = smul.u32 16, %s22
        $region101: #{tpu_custom_call.1} parent=80 // pred_fallthru
          _
      $region81: #{tpu_custom_call.1} parent=5 // pred_fallthru
        _
      %p1148 = scmp.le.s32.totalorder 2, %s13
      // Predicated region
      $region102: #{tpu_custom_call.1} parent=5 // pred_check
        %p1149 = pneg %p1148
      $region103: #{tpu_custom_call.1} parent=5 // pred_check_branch
        %1151 = sbr.rel (%p1149) target = $region105
      $region104: #{tpu_custom_call.1} parent=5 // pred_region
        %s1152 = ssub.s32 %s13, 2
        // Predicated region
        $region106: #{tpu_custom_call.1} parent=104 // pred_check
          %p1153 = pneg %p187
        $region107: #{tpu_custom_call.1} parent=104 // pred_check_branch
          %1155 = sbr.rel (%p1153) target = $region109
        $region108: #{tpu_custom_call.1} parent=104 // pred_region
          %s1156 = smul.u32 16, %s24
          %p1157 = scmp.lt.s32.totalorder %s1156, 31
          %s1158 = scalar_select %p1157, %s1156, 31
          %s1159 = smul.addr %s1158, 8
          %s1160 = scalar_lea.vmem %s6, %s1159
        $region109: #{tpu_custom_call.1} parent=104 // pred_fallthru
          _
      $region105: #{tpu_custom_call.1} parent=5 // pred_fallthru
        _
    $region6: #{tpu_custom_call.1} parent=1 // loop_footer
      %s17 = sadd.s32 1, %s13
    $region7: #{tpu_custom_call.1} parent=1 // loop_footer_branch
      %12 = sbr.rel target = $region3
    $region8: #{tpu_custom_call.1} parent=1 // loop_exit
      _
    %1161 = vsyncpa [#allocation4], 1
    %s1162 = scalar_lea.sflag [#allocation4], 1
    %1163 = vsyncpa %s1162, 1

</llo_original>
